<compile_context>
chip_gen: v6e
topology: v6e:2x2x1
jax: 0.10.0
libtpu: 0.0.40
codegen_flags: <defaults>
</compile_context>

<pallas_src>
import functools

import jax
import jax.numpy as jnp
import numpy as np
from jax.experimental import pallas as pl
from jax.experimental.pallas import tpu as pltpu


_BOX_ROW0 = 8      # output rows 8 .. 8+D-1 carry the per-dim L1 per-lane partial sums
_ROW_TILE_MAX = 1024


# ----------------------------------------------------------------------------------
# Kernel: grid = (B, nR) with B "parallel", row-tiles "arbitrary".
#   * every step: lane-dense negative focal loss on a (TR, 128) tile of hm/gt, reduced to
#     per-lane partials and accumulated into output row 0 (output block is resident across
#     the row-tile axis).
#   * first row tile only (pl.when): vectorized positive focal + num_pos + masked L1 on the
#     small (2, Mp) / (D, Mp) gathered-peak blocks, written as per-lane partials into rows
#     1, 2 and 8..8+D-1.
# alpha = 2.0, gamma = 4.0 (FastFocalLoss defaults) are hard-coded as integer powers.
# ----------------------------------------------------------------------------------
def _make_kernel(D, Mp, out_rows):
    nchunk = Mp // 128
    eps = 1e-12

    def kernel(hm_ref, gt_ref, posm_ref, pbox_ref, tbox_ref, out_ref):
        r = pl.program_id(1)

        # -------- per-batch object math, once (small blocks stay resident across r) --------
        @pl.when(r == 0)
        def _init():
            posm = posm_ref[0].astype(jnp.float32)        # (2, Mp): row0 logits, row1 mask
            pb = pbox_ref[0].astype(jnp.float32)          # (D, Mp) gathered box preds
            tb = tbox_ref[0].astype(jnp.float32)          # (D, Mp) box targets
            logit = posm[0:1, :]                          # (1, Mp)
            m = posm[1:2, :]                              # (1, Mp) binary object mask
            pp = jnp.clip(jax.nn.sigmoid(logit), 1e-4, 1.0 - 1e-4)
            omp = 1.0 - pp
            pos_t = jnp.log(pp + eps) * omp * omp * m     # (1, Mp) positive focal terms
            l1 = jnp.abs(pb - tb) * m                     # (D, Mp) == |pb*m - tb*m| (binary m)

            # fold Mp into 128-lane per-lane partials (static chunk loop, nchunk small)
            pos_lanes = pos_t[:, 0:128]
            np_lanes = m[:, 0:128]
            box_lanes = l1[:, 0:128]
            for c in range(1, nchunk):
                s = slice(c * 128, (c + 1) * 128)
                pos_lanes = pos_lanes + pos_t[:, s]
                np_lanes = np_lanes + m[:, s]
                box_lanes = box_lanes + l1[:, s]

            pieces = [jnp.zeros((1, 128), jnp.float32),            # row 0: neg acc (below)
                      pos_lanes,                                   # row 1
                      np_lanes,                                    # row 2
                      jnp.zeros((_BOX_ROW0 - 3, 128), jnp.float32),
                      box_lanes]                                   # rows 8..8+D-1
            tail = out_rows - _BOX_ROW0 - D
            if tail > 0:
                pieces.append(jnp.zeros((tail, 128), jnp.float32))
            out_ref[0] = jnp.concatenate(pieces, axis=0)

        # -------- dense negative focal loss on this row tile (lane-dense) --------
        x = hm_ref[0].astype(jnp.float32)                 # (TR, 128) logits
        t = gt_ref[0].astype(jnp.float32)                 # (TR, 128) gaussian heatmap
        p = jnp.clip(jax.nn.sigmoid(x), 1e-4, 1.0 - 1e-4)
        omt = 1.0 - t
        gw = omt * omt
        gw = gw * gw                                      # (1 - t)^4   (gamma = 4)
        terms = jnp.log(1.0 - p + eps) * (p * p) * gw     # alpha = 2
        neg_lanes = jnp.sum(terms, axis=0, keepdims=True)  # (1, 128) per-lane partials
        out_ref[0, 0:1, :] = out_ref[0, 0:1, :] + neg_lanes

    return kernel


@functools.lru_cache(maxsize=None)
def _build_call(B, RCp, TR, Mp, D, out_rows, hm_dtype_name, gt_dtype_name):
    kernel = _make_kernel(D, Mp, out_rows)
    nR = RCp // TR

    grid_spec = pltpu.PrefetchScalarGridSpec(
        num_scalar_prefetch=0,
        grid=(B, nR),
        in_specs=[
            pl.BlockSpec((1, TR, 128), lambda b, r: (b, r, 0)),    # hm logits (row tile)
            pl.BlockSpec((1, TR, 128), lambda b, r: (b, r, 0)),    # gt heatmap (row tile)
            pl.BlockSpec((1, 2, Mp), lambda b, r: (b, 0, 0)),      # [pos logits; mask]
            pl.BlockSpec((1, D, Mp), lambda b, r: (b, 0, 0)),      # gathered box preds
            pl.BlockSpec((1, D, Mp), lambda b, r: (b, 0, 0)),      # box targets
        ],
        out_specs=pl.BlockSpec((1, out_rows, 128), lambda b, r: (b, 0, 0)),
    )

    # VMEM budget: dtype-aware per-step bytes (double buffered), clamped to the chip's
    # real VMEM capacity (v7x only has 64 MiB per TensorCore).
    itm = jnp.dtype(hm_dtype_name).itemsize
    itg = jnp.dtype(gt_dtype_name).itemsize
    per_step = (2 * TR * 128 * (itm + itg)          # double-buffered hm + gt tiles
                + 2 * (2 + 2 * D) * Mp * 4          # small gathered-peak blocks (f32)
                + out_rows * 128 * 4)               # resident output block
    need = int(per_step) + (8 << 20)                # compiler scratch headroom
    try:
        phys = int(pltpu.get_tpu_info().vmem_capacity_bytes)
    except Exception:
        phys = 64 << 20                             # conservative (v7x) fallback
    cap = (phys * 3) // 4
    vmem_limit = int(min(max(need, min(32 << 20, cap)), cap))

    return pl.pallas_call(
        kernel,
        grid_spec=grid_spec,
        out_shape=jax.ShapeDtypeStruct((B, out_rows, 128), jnp.float32),
        compiler_params=pltpu.CompilerParams(
            dimension_semantics=("parallel", "arbitrary"),
            vmem_limit_bytes=vmem_limit,
        ),
    )


@jax.jit
def center_det_task_partial_losses(hm_logits, reg, height, dim3, rot,
                                   gt_hm, ind, mask, cat, target_anno_box):
    """Runs the fused Pallas kernel for one detection task.

    Returns (neg_loss_sum, pos_loss_sum, num_pos, per_dim_l1_sum[D])."""
    B, C, H, W = hm_logits.shape
    HW = H * W
    M = ind.shape[1]

    anno = jnp.concatenate([reg, height, dim3, rot], axis=1)   # stays in model dtype
    D = anno.shape[1]

    # ---- dense heatmap blocks: free contiguous reshape NCHW -> (B, rows, 128) ----
    hw_pad = (-HW) % 128
    HWp = HW + hw_pad
    hw_rows = HWp // 128
    hm_f = hm_logits.reshape(B, C, HW)
    gt_f = gt_hm.reshape(B, C, HW)
    if hw_pad:
        hm_f = jnp.pad(hm_f, ((0, 0), (0, 0), (0, hw_pad)))
        # pad gt with 1.0 so (1 - t)^4 == 0 on padded pixels -> zero neg-loss contribution
        gt_f = jnp.pad(gt_f, ((0, 0), (0, 0), (0, hw_pad)), constant_values=1.0)
    RC = C * hw_rows
    hm2 = hm_f.reshape(B, RC, 128)
    gt2 = gt_f.reshape(B, RC, 128)

    # row tiling (second, "arbitrary" grid axis): <=1024 rows per tile, pad rows to a
    # multiple of the tile (hm pad 0, gt pad 1.0 -> zero contribution).
    nR = max(1, (RC + _ROW_TILE_MAX - 1) // _ROW_TILE_MAX)
    rows_per = (RC + nR - 1) // nR
    TR = ((rows_per + 7) // 8) * 8
    RCp = nR * TR
    if RCp > RC:
        hm2 = jnp.pad(hm2, ((0, 0), (0, RCp - RC), (0, 0)))
        gt2 = jnp.pad(gt2, ((0, 0), (0, RCp - RC), (0, 0)), constant_values=1.0)

    # ---- tiny wrapper-side gathers of the M peak values (no D*HW streaming) ----
    ind_c = jnp.clip(ind.astype(jnp.int32), 0, HW - 1)
    cat_c = jnp.clip(cat.astype(jnp.int32), 0, C - 1)
    pos_logit = jnp.take_along_axis(hm_logits.reshape(B, C * HW),
                                    cat_c * HW + ind_c, axis=1).astype(jnp.float32)   # (B, M)
    pred_box = jnp.take_along_axis(
        anno.reshape(B, D, HW),
        jnp.broadcast_to(ind_c[:, None, :], (B, D, M)), axis=2).astype(jnp.float32)   # (B, D, M)

    # no-'vel' branch: target_box = target_box[..., [0,1,2,3,4,5,-2,-1]]
    tbox = jnp.concatenate([target_anno_box[..., :6], target_anno_box[..., -2:]], axis=-1)
    targ_box = jnp.swapaxes(tbox, 1, 2).astype(jnp.float32)                            # (B, D, M)

    mask_f = mask.astype(jnp.float32)
    posm = jnp.stack([pos_logit, mask_f], axis=1)                                      # (B, 2, M)

    # pad the object axis to a lane multiple; padded objects have mask = 0 -> no effect
    Mp = max(128, ((M + 127) // 128) * 128)
    mpad = Mp - M
    if mpad:
        posm = jnp.pad(posm, ((0, 0), (0, 0), (0, mpad)))
        pred_box = jnp.pad(pred_box, ((0, 0), (0, 0), (0, mpad)))
        targ_box = jnp.pad(targ_box, ((0, 0), (0, 0), (0, mpad)))

    out_rows = ((_BOX_ROW0 + D + 7) // 8) * 8
    call = _build_call(B, RCp, TR, Mp, D, out_rows,
                       jnp.dtype(hm2.dtype).name, jnp.dtype(gt2.dtype).name)
    part = call(hm2, gt2, posm, pred_box, targ_box)            # (B, out_rows, 128) partials

    neg = jnp.sum(part[:, 0, :])
    pos = jnp.sum(part[:, 1, :])
    npos = jnp.sum(part[:, 2, :])
    box = jnp.sum(part[:, _BOX_ROW0:_BOX_ROW0 + D, :], axis=(0, 2))    # (D,)
    return neg, pos, npos, box


class CenterDetLossPallas:
    """JAX/Pallas re-implementation of CenterDetLoss.forward (no-'vel' branch)."""

    def __init__(self, det_weight=1.0, loc_weight=0.25, hm_weight=1.0, code_weights=()):
        self.det_weight = det_weight
        self.loc_weight = loc_weight
        self.hm_weight = hm_weight
        self.code_weights = tuple(code_weights)

    def __call__(self, preds_dicts, gt_dicts, name="Det"):
        cw = jnp.asarray(self.code_weights, jnp.float32)
        total_loss = jnp.float32(0.0)
        records = []
        for task_id, pd in enumerate(preds_dicts):
            neg, pos, npos, box_l1 = center_det_task_partial_losses(
                pd["hm"], pd["reg"], pd["height"], pd["dim"], pd["rot"],
                gt_dicts["hm"][task_id], gt_dicts["ind"][task_id],
                gt_dicts["mask"][task_id], gt_dicts["cat"][task_id],
                gt_dicts["anno_box"][task_id])

            # FastFocalLoss combination
            safe_np = jnp.maximum(npos, 1.0)
            hm_loss = jnp.where(npos == 0,
                                -neg * self.hm_weight,
                                -(pos + neg) * self.hm_weight / safe_np)
            # RegLoss combination (obj_num = mask.sum() + 1e-4)
            box_loss = box_l1 * cw * self.loc_weight / (npos + 0.0001)
            loc_loss = box_loss.sum()

            total_loss = total_loss + (hm_loss + loc_loss) * self.det_weight
            records.append((task_id, hm_loss, loc_loss, box_loss, npos))

        # single host transfer for the logging dict (keeps the per-task kernels pipelined)
        fetched = jax.device_get([r[1:] for r in records])
        loss_dict = {}
        for (task_id, *_), (hm_l, loc_l, bx, np_) in zip(records, fetched):
            loss_dict.update({
                "{}/hm_loss/{}".format(name, task_id): float(hm_l),
                "{}/loc_loss/{}".format(name, task_id): float(loc_l),
                "{}/reg_loss/{}".format(name, task_id): float(bx[0:3].mean()),
                "{}/dim_loss/{}".format(name, task_id): float(bx[3:6].mean()),
                "{}/rot_loss/{}".format(name, task_id): float(bx[6:8].mean()),
                "{}/num_pos/{}".format(name, task_id): float(np_),
            })
        return total_loss, loss_dict


# ----------------------------------------------------------------------------------
# Pure-JAX reference (mirrors the PyTorch math) for correctness checking.
# ----------------------------------------------------------------------------------
def _ref_total_loss(preds_dicts, gt_dicts, det_weight, loc_weight, hm_weight, code_weights):
    eps = 1e-12
    total = jnp.float32(0.0)
    cw = jnp.asarray(code_weights, jnp.float32)
    for t, pd in enumerate(preds_dicts):
        hm = jnp.clip(jax.nn.sigmoid(pd["hm"].astype(jnp.float32)), 1e-4, 1 - 1e-4)
        gt_hm = gt_dicts["hm"][t].astype(jnp.float32)
        ind = gt_dicts["ind"][t].astype(jnp.int32)
        mask = gt_dicts["mask"][t].astype(jnp.float32)
        cat = gt_dicts["cat"][t].astype(jnp.int32)
        B, C, H, W = hm.shape
        HW = H * W
        M = ind.shape[1]

        neg = (jnp.log(1 - hm + eps) * hm ** 2 * (1 - gt_hm) ** 4).sum()
        feat = hm.transpose(0, 2, 3, 1).reshape(B, HW, C)
        gathered = jnp.take_along_axis(feat, jnp.broadcast_to(ind[:, :, None], (B, M, C)), axis=1)
        pos_pred = jnp.take_along_axis(gathered, cat[:, :, None], axis=2)
        num_pos = mask.sum()
        pos = (jnp.log(pos_pred + eps) * (1 - pos_pred) ** 2 * mask[:, :, None]).sum()
        hm_loss = jnp.where(num_pos == 0, -neg * hm_weight,
                            -(pos + neg) * hm_weight / jnp.maximum(num_pos, 1.0))

        anno = jnp.concatenate([pd["reg"], pd["height"], pd["dim"], pd["rot"]],
                               axis=1).astype(jnp.float32)
        D = anno.shape[1]
        tb = gt_dicts["anno_box"][t].astype(jnp.float32)
        tb = jnp.concatenate([tb[..., :6], tb[..., -2:]], axis=-1)
        feat_b = anno.transpose(0, 2, 3, 1).reshape(B, HW, D)
        pred_b = jnp.take_along_axis(feat_b, jnp.broadcast_to(ind[:, :, None], (B, M, D)), axis=1)
        m3 = mask[:, :, None]
        obj_num = mask.sum() + 0.0001
        l1 = jnp.abs(pred_b * m3 - tb * m3)
        box_loss = l1.sum(axis=(0, 1)) * cw * loc_weight / obj_num
        total = total + (hm_loss + box_loss.sum()) * det_weight
    return total


if __name__ == "__main__":
    key = jax.random.PRNGKey(0)
    B, C, H, W, M = 2, 4, 16, 16, 8
    num_tasks = 2
    code_weights = [1.0, 1.0, 1.0, 1.0, 1.0, 1.0, 1.0, 1.0]  # deterministic, no checkpoint

    preds_dicts = []
    gt_hm_list, gt_ind_list, gt_mask_list, gt_cat_list, gt_anno_list = [], [], [], [], []
    for t in range(num_tasks):
        keys = jax.random.split(jax.random.fold_in(key, t), 10)
        preds_dicts.append({
            "hm": jax.random.normal(keys[0], (B, C, H, W), jnp.float32),
            "reg": jax.random.normal(keys[1], (B, 2, H, W), jnp.float32),
            "height": jax.random.normal(keys[2], (B, 1, H, W), jnp.float32),
            "dim": jax.random.normal(keys[3], (B, 3, H, W), jnp.float32),
            "rot": jax.random.normal(keys[4], (B, 2, H, W), jnp.float32),
        })
        gt_hm_list.append(jax.random.uniform(keys[5], (B, C, H, W), jnp.float32))
        gt_ind_list.append(jax.random.randint(keys[6], (B, M), 0, H * W, jnp.int32))
        gt_mask_list.append(
            (jax.random.uniform(keys[7], (B, M)) > 0.3).astype(jnp.int32))
        gt_cat_list.append(jax.random.randint(keys[8], (B, M), 0, C, jnp.int32))
        gt_anno_list.append(jax.random.normal(keys[9], (B, M, 10), jnp.float32))

    gt_dicts = {"hm": gt_hm_list, "ind": gt_ind_list, "mask": gt_mask_list,
                "cat": gt_cat_list, "anno_box": gt_anno_list}

    loss_mod = CenterDetLossPallas(det_weight=1.0, loc_weight=0.25, hm_weight=1.0,
                                   code_weights=code_weights)
    total_loss, loss_dict = loss_mod(preds_dicts, gt_dicts, name="Det")
    total_loss = jax.block_until_ready(total_loss)

    ref_total = jax.block_until_ready(
        _ref_total_loss(preds_dicts, gt_dicts, 1.0, 0.25, 1.0, code_weights))

    np.testing.assert_allclose(np.asarray(total_loss), np.asarray(ref_total),
                               rtol=5e-4, atol=1e-3)
    print("KERNEL_OK")
</pallas_src>

<mosaic_0001>
module attributes {stable_mosaic.version = 11 : i64} {
  func.func @kernel(%arg0: i32, %arg1: i32, %arg2: memref<1x8x128xf32, #tpu.memory_space<vmem>>, %arg3: memref<1x8x128xf32, #tpu.memory_space<vmem>>, %arg4: memref<1x2x128xf32, #tpu.memory_space<vmem>>, %arg5: memref<1x8x128xf32, #tpu.memory_space<vmem>>, %arg6: memref<1x8x128xf32, #tpu.memory_space<vmem>>, %arg7: memref<1x16x128xf32, #tpu.memory_space<vmem>>) attributes {dimension_semantics = [#tpu.dimension_semantics<parallel>, #tpu.dimension_semantics<arbitrary>], iteration_bounds = array<i64: 2, 1>, scalar_prefetch = 0 : i64, scratch_operands = 0 : i64, tpu.core_type = #tpu.core_type<tc>, window_params = [{transform_indices = @transform_0, window_bounds = array<i64: 1, 8, 128>}, {transform_indices = @transform_1, window_bounds = array<i64: 1, 8, 128>}, {transform_indices = @transform_2, window_bounds = array<i64: 1, 2, 128>}, {transform_indices = @transform_3, window_bounds = array<i64: 1, 8, 128>}, {transform_indices = @transform_4, window_bounds = array<i64: 1, 8, 128>}, {transform_indices = @transform_5, window_bounds = array<i64: 1, 16, 128>}]} {
    %c0_i32 = arith.constant 0 : i32
    %0 = arith.cmpi eq, %arg1, %c0_i32 : i32
    %1 = arith.extui %0 : i1 to i32
    %c0_i32_0 = arith.constant 0 : i32
    %2 = arith.cmpi ne, %1, %c0_i32_0 : i32
    scf.if %2 {
      %c0_18 = arith.constant 0 : index
      %c0_19 = arith.constant 0 : index
      %c0_20 = arith.constant 0 : index
      %36 = vector.load %arg4[%c0_18, %c0_19, %c0_20] : memref<1x2x128xf32, #tpu.memory_space<vmem>>, vector<1x2x128xf32>
      %37 = vector.shape_cast %36 : vector<1x2x128xf32> to vector<2x128xf32>
      %c0_21 = arith.constant 0 : index
      %c0_22 = arith.constant 0 : index
      %c0_23 = arith.constant 0 : index
      %38 = vector.load %arg5[%c0_21, %c0_22, %c0_23] : memref<1x8x128xf32, #tpu.memory_space<vmem>>, vector<1x8x128xf32>
      %39 = vector.shape_cast %38 : vector<1x8x128xf32> to vector<8x128xf32>
      %c0_24 = arith.constant 0 : index
      %c0_25 = arith.constant 0 : index
      %c0_26 = arith.constant 0 : index
      %40 = vector.load %arg6[%c0_24, %c0_25, %c0_26] : memref<1x8x128xf32, #tpu.memory_space<vmem>>, vector<1x8x128xf32>
      %41 = vector.shape_cast %40 : vector<1x8x128xf32> to vector<8x128xf32>
      %42 = vector.extract_strided_slice %37 {offsets = [0, 0], sizes = [1, 128], strides = [1, 1]} : vector<2x128xf32> to vector<1x128xf32>
      %43 = vector.extract_strided_slice %37 {offsets = [1, 0], sizes = [1, 128], strides = [1, 1]} : vector<2x128xf32> to vector<1x128xf32>
      %44 = arith.negf %42 : vector<1x128xf32>
      %45 = math.exp %44 : vector<1x128xf32>
      %cst_27 = arith.constant 1.000000e+00 : f32
      %46 = vector.broadcast %cst_27 : f32 to vector<1x128xf32>
      %47 = arith.addf %46, %45 : vector<1x128xf32>
      %48 = arith.divf %46, %47 : vector<1x128xf32>
      %cst_28 = arith.constant 9.99999974E-5 : f32
      %cst_29 = arith.constant 0.999899983 : f32
      %49 = vector.broadcast %cst_28 : f32 to vector<1x128xf32>
      %50 = arith.maximumf %49, %48 : vector<1x128xf32>
      %51 = vector.broadcast %cst_29 : f32 to vector<1x128xf32>
      %52 = arith.minimumf %51, %50 : vector<1x128xf32>
      %cst_30 = arith.constant 1.000000e+00 : f32
      %53 = vector.broadcast %cst_30 : f32 to vector<1x128xf32>
      %54 = arith.subf %53, %52 : vector<1x128xf32>
      %cst_31 = arith.constant 9.99999996E-13 : f32
      %55 = vector.broadcast %cst_31 : f32 to vector<1x128xf32>
      %56 = arith.addf %52, %55 : vector<1x128xf32>
      %57 = math.log %56 : vector<1x128xf32>
      %58 = arith.mulf %57, %54 : vector<1x128xf32>
      %59 = arith.mulf %58, %54 : vector<1x128xf32>
      %60 = arith.mulf %59, %43 : vector<1x128xf32>
      %61 = arith.subf %39, %41 : vector<8x128xf32>
      %62 = math.absf %61 : vector<8x128xf32>
      %63 = vector.broadcast %43 : vector<1x128xf32> to vector<8x128xf32>
      %64 = arith.mulf %62, %63 : vector<8x128xf32>
      %cst_32 = arith.constant 0.000000e+00 : f32
      %65 = vector.broadcast %cst_32 : f32 to vector<1x128xf32>
      %cst_33 = arith.constant 0.000000e+00 : f32
      %66 = vector.broadcast %cst_33 : f32 to vector<5x128xf32>
      %67 = tpu.concatenate %65, %60, %43, %66, %64 in 0 : vector<1x128xf32>, vector<1x128xf32>, vector<1x128xf32>, vector<5x128xf32>, vector<8x128xf32> -> vector<16x128xf32>
      %c0_34 = arith.constant 0 : index
      %c0_35 = arith.constant 0 : index
      %c0_36 = arith.constant 0 : index
      %68 = vector.load %arg7[%c0_34, %c0_35, %c0_36] : memref<1x16x128xf32, #tpu.memory_space<vmem>>, vector<1x16x128xf32>
      %69 = vector.shape_cast %68 : vector<1x16x128xf32> to vector<16x128xf32>
      %70 = vector.shape_cast %67 : vector<16x128xf32> to vector<1x16x128xf32>
      tpu.vector_store %arg7[%c0_34, %c0_35, %c0_36], %70 {strides = array<i32>} : memref<1x16x128xf32, #tpu.memory_space<vmem>>, vector<1x16x128xf32>,
    } else {
    }
    %c0 = arith.constant 0 : index
    %c0_1 = arith.constant 0 : index
    %c0_2 = arith.constant 0 : index
    %3 = vector.load %arg2[%c0, %c0_1, %c0_2] : memref<1x8x128xf32, #tpu.memory_space<vmem>>, vector<1x8x128xf32>
    %4 = vector.shape_cast %3 : vector<1x8x128xf32> to vector<8x128xf32>
    %c0_3 = arith.constant 0 : index
    %c0_4 = arith.constant 0 : index
    %c0_5 = arith.constant 0 : index
    %5 = vector.load %arg3[%c0_3, %c0_4, %c0_5] : memref<1x8x128xf32, #tpu.memory_space<vmem>>, vector<1x8x128xf32>
    %6 = vector.shape_cast %5 : vector<1x8x128xf32> to vector<8x128xf32>
    %7 = arith.negf %4 : vector<8x128xf32>
    %8 = math.exp %7 : vector<8x128xf32>
    %cst = arith.constant 1.000000e+00 : f32
    %9 = vector.broadcast %cst : f32 to vector<8x128xf32>
    %10 = arith.addf %9, %8 : vector<8x128xf32>
    %11 = arith.divf %9, %10 : vector<8x128xf32>
    %cst_6 = arith.constant 9.99999974E-5 : f32
    %cst_7 = arith.constant 0.999899983 : f32
    %12 = vector.broadcast %cst_6 : f32 to vector<8x128xf32>
    %13 = arith.maximumf %12, %11 : vector<8x128xf32>
    %14 = vector.broadcast %cst_7 : f32 to vector<8x128xf32>
    %15 = arith.minimumf %14, %13 : vector<8x128xf32>
    %cst_8 = arith.constant 1.000000e+00 : f32
    %16 = vector.broadcast %cst_8 : f32 to vector<8x128xf32>
    %17 = arith.subf %16, %6 : vector<8x128xf32>
    %18 = arith.mulf %17, %17 : vector<8x128xf32>
    %19 = arith.mulf %18, %18 : vector<8x128xf32>
    %cst_9 = arith.constant 1.000000e+00 : f32
    %20 = vector.broadcast %cst_9 : f32 to vector<8x128xf32>
    %21 = arith.subf %20, %15 : vector<8x128xf32>
    %cst_10 = arith.constant 9.99999996E-13 : f32
    %22 = vector.broadcast %cst_10 : f32 to vector<8x128xf32>
    %23 = arith.addf %21, %22 : vector<8x128xf32>
    %24 = math.log %23 : vector<8x128xf32>
    %25 = arith.mulf %15, %15 : vector<8x128xf32>
    %26 = arith.mulf %24, %25 : vector<8x128xf32>
    %27 = arith.mulf %26, %19 : vector<8x128xf32>
    %cst_11 = arith.constant dense<0.000000e+00> : vector<128xf32>
    %28 = vector.multi_reduction <add>, %27, %cst_11 [0] : vector<8x128xf32> to vector<128xf32>
    %29 = vector.shape_cast %28 : vector<128xf32> to vector<1x128xf32>
    %c0_12 = arith.constant 0 : index
    %c0_13 = arith.constant 0 : index
    %c0_14 = arith.constant 0 : index
    %30 = vector.load %arg7[%c0_12, %c0_13, %c0_14] : memref<1x16x128xf32, #tpu.memory_space<vmem>>, vector<1x1x128xf32>
    %31 = vector.shape_cast %30 : vector<1x1x128xf32> to vector<1x128xf32>
    %32 = arith.addf %31, %29 : vector<1x128xf32>
    %c0_15 = arith.constant 0 : index
    %c0_16 = arith.constant 0 : index
    %c0_17 = arith.constant 0 : index
    %33 = vector.load %arg7[%c0_15, %c0_16, %c0_17] : memref<1x16x128xf32, #tpu.memory_space<vmem>>, vector<1x1x128xf32>
    %34 = vector.shape_cast %33 : vector<1x1x128xf32> to vector<1x128xf32>
    %35 = vector.shape_cast %32 : vector<1x128xf32> to vector<1x1x128xf32>
    tpu.vector_store %arg7[%c0_15, %c0_16, %c0_17], %35 {strides = array<i32>} : memref<1x16x128xf32, #tpu.memory_space<vmem>>, vector<1x1x128xf32>,
    return
  }
  func.func @transform_0(%arg0: i32, %arg1: i32) -> (i32, i32, i32) {
    %c0_i32 = arith.constant 0 : i32
    %c0_i32_0 = arith.constant 0 : i32
    return %arg0, %arg1, %c0_i32 : i32, i32, i32
  }
  func.func @transform_1(%arg0: i32, %arg1: i32) -> (i32, i32, i32) {
    %c0_i32 = arith.constant 0 : i32
    %c0_i32_0 = arith.constant 0 : i32
    return %arg0, %arg1, %c0_i32 : i32, i32, i32
  }
  func.func @transform_2(%arg0: i32, %arg1: i32) -> (i32, i32, i32) {
    %c0_i32 = arith.constant 0 : i32
    %c0_i32_0 = arith.constant 0 : i32
    %c0_i32_1 = arith.constant 0 : i32
    return %arg0, %c0_i32, %c0_i32_0 : i32, i32, i32
  }
  func.func @transform_3(%arg0: i32, %arg1: i32) -> (i32, i32, i32) {
    %c0_i32 = arith.constant 0 : i32
    %c0_i32_0 = arith.constant 0 : i32
    %c0_i32_1 = arith.constant 0 : i32
    return %arg0, %c0_i32, %c0_i32_0 : i32, i32, i32
  }
  func.func @transform_4(%arg0: i32, %arg1: i32) -> (i32, i32, i32) {
    %c0_i32 = arith.constant 0 : i32
    %c0_i32_0 = arith.constant 0 : i32
    %c0_i32_1 = arith.constant 0 : i32
    return %arg0, %c0_i32, %c0_i32_0 : i32, i32, i32
  }
  func.func @transform_5(%arg0: i32, %arg1: i32) -> (i32, i32, i32) {
    %c0_i32 = arith.constant 0 : i32
    %c0_i32_0 = arith.constant 0 : i32
    %c0_i32_1 = arith.constant 0 : i32
    return %arg0, %c0_i32, %c0_i32_0 : i32, i32, i32
  }
}

</mosaic_0001>

<llo_original>
// kernel: center_det_task_partial_losses.1
$region0: #{center_det_task_partial_losses.1}
  #allocation0 [shape = 'u32[]', space=smem, size = 0x4, offset = 0x4, fixed_abs, tag = 'smem constant byte address 0x4 - core index']
  #allocation1 [shape = 'u32[144,128]{1,0:T(1,128)}', space=vmem, size = 0x12000, scoped, tag = 'internal scratch']
  %s0 = inlined_call_operand.vmem [shape: f32[2,8,128], index: 0, kind: input, shape index: {}]
  %s1 = inlined_call_operand.vmem [shape: f32[2,8,128], index: 1, kind: input, shape index: {}]
  %s2 = inlined_call_operand.vmem [shape: f32[2,2,128], index: 2, kind: input, shape index: {}]
  %s3 = inlined_call_operand.vmem [shape: f32[2,8,128], index: 3, kind: input, shape index: {}]
  %s4 = inlined_call_operand.vmem [shape: f32[2,8,128], index: 4, kind: input, shape index: {}]
  %s5 = inlined_call_operand.vmem [shape: f32[2,16,128], index: 5, kind: output, shape index: {}]
  %s6 = sld [smem:[#allocation0]]
  $region57: #{center_det_task_partial_losses.1} parent=0
    _
  %s8 = ssub.s32 1, %s6
  %s9 = scalar_select 0, %s8, %s6
  loop: start=0, step=1, limit=4
  $region2: #{center_det_task_partial_losses.1} parent=0 // loop_pre_header
    _
  $region3: #{center_det_task_partial_losses.1} parent=0 // loop_header
    %s11 = sphi 0, %s15
    %p12 = scmp.ge.s32.totalorder %s11, 4
    %s18 = sphi 0, %s30
    %s19 = sphi 0, %s26
    %s20 = sphi 0, %s18
    %s21 = sphi 0, %s19
    %s22 = sphi 0, %s20
    %s23 = sphi 0, %s21
    %s35 = sphi 0, %s37
    %s38 = sphi 0, %s35
    %s39 = sphi 0, %s38
    %s55 = sphi 0, %s39
    %s63 = sphi 0, %s65
    %s66 = sphi 0, %s63
    %s67 = sphi 0, %s66
    %s83 = sphi 0, %s67
    %s89 = sphi 0, %s91
    %s92 = sphi 0, %s89
    %s93 = sphi 0, %s92
    %s109 = sphi 0, %s93
    %s115 = sphi 0, %s117
    %s118 = sphi 0, %s115
    %s119 = sphi 0, %s118
    %s135 = sphi 0, %s119
    %s141 = sphi 0, %s143
    %s144 = sphi 0, %s141
    %s145 = sphi 0, %s144
    %s161 = sphi 0, %s145
    %s167 = sphi 0, %s169
    %s170 = sphi 0, %s167
    %s171 = sphi 0, %s170
    %s187 = sphi 0, %s171
  $region4: #{center_det_task_partial_losses.1} parent=0 // loop_header_branch
    %14 = sbr.rel (%p12) target = $region8
  $region5: #{center_det_task_partial_losses.1} parent=0 // loop_body
    %s16 = ssub.s32 %s11, 1
    %s17 = ssub.s32 %s11, 2
    %s24 = sadd.s32 1, %s19
    %p25 = scmp.ge.s32.totalorder %s24, 1
    %s26 = scalar_select %p25, 0, %s24
    %s27 = sadd.s32 1, %s18
    %s28 = scalar_select %p25, %s27, %s18
    %p29 = scmp.ge.s32.totalorder %s28, 2
    %s30 = scalar_select %p29, 0, %s28
    %s31 = ssub.s32 %s18, %s30
    %s32 = ssub.s32 %s19, %s26
    %s33 = sor.u32 %s31, %s32
    %p34 = scmp.eq.s32.totalorder %s33, 0
    %s36 = sadd.s32 %s35, 1
    %s37 = scalar_select %p34, %s35, %s36
    %p40 = pneg %p34
    %p41 = scmp.eq.s32.totalorder %s11, 1
    %p42 = por %p40, %p41
    %p43 = scmp.ne.s32.totalorder %s35, %s38
    %p44 = scmp.eq.s32.totalorder %s11, 0
    %p45 = por %p43, %p44
    %p46 = scmp.ne.s32.totalorder %s35, %s38
    %p47 = scmp.eq.s32.totalorder %s16, 1
    %p48 = por %p46, %p47
    %p49 = scmp.ne.s32.totalorder %s38, %s39
    %p50 = scmp.eq.s32.totalorder %s16, 0
    %p51 = por %p49, %p50
    %p52 = scmp.ne.s32.totalorder %s38, %s39
    %p53 = scmp.eq.s32.totalorder %s17, 1
    %p54 = por %p52, %p53
    %p56 = scmp.ne.s32.totalorder %s39, %s55
    %p57 = scmp.eq.s32.totalorder %s17, 0
    %p58 = por %p56, %p57
    %s59 = ssub.s32 %s18, %s30
    %s60 = ssub.s32 %s19, %s26
    %s61 = sor.u32 %s59, %s60
    %p62 = scmp.eq.s32.totalorder %s61, 0
    %s64 = sadd.s32 %s63, 1
    %s65 = scalar_select %p62, %s63, %s64
    %p68 = pneg %p62
    %p69 = scmp.eq.s32.totalorder %s11, 1
    %p70 = por %p68, %p69
    %p71 = scmp.ne.s32.totalorder %s63, %s66
    %p72 = scmp.eq.s32.totalorder %s11, 0
    %p73 = por %p71, %p72
    %p74 = scmp.ne.s32.totalorder %s63, %s66
    %p75 = scmp.eq.s32.totalorder %s16, 1
    %p76 = por %p74, %p75
    %p77 = scmp.ne.s32.totalorder %s66, %s67
    %p78 = scmp.eq.s32.totalorder %s16, 0
    %p79 = por %p77, %p78
    %p80 = scmp.ne.s32.totalorder %s66, %s67
    %p81 = scmp.eq.s32.totalorder %s17, 1
    %p82 = por %p80, %p81
    %p84 = scmp.ne.s32.totalorder %s67, %s83
    %p85 = scmp.eq.s32.totalorder %s17, 0
    %p86 = por %p84, %p85
    %s87 = ssub.s32 %s18, %s30
    %p88 = scmp.eq.s32.totalorder %s87, 0
    %s90 = sadd.s32 %s89, 1
    %s91 = scalar_select %p88, %s89, %s90
    %p94 = pneg %p88
    %p95 = scmp.eq.s32.totalorder %s11, 1
    %p96 = por %p94, %p95
    %p97 = scmp.ne.s32.totalorder %s89, %s92
    %p98 = scmp.eq.s32.totalorder %s11, 0
    %p99 = por %p97, %p98
    %p100 = scmp.ne.s32.totalorder %s89, %s92
    %p101 = scmp.eq.s32.totalorder %s16, 1
    %p102 = por %p100, %p101
    %p103 = scmp.ne.s32.totalorder %s92, %s93
    %p104 = scmp.eq.s32.totalorder %s16, 0
    %p105 = por %p103, %p104
    %p106 = scmp.ne.s32.totalorder %s92, %s93
    %p107 = scmp.eq.s32.totalorder %s17, 1
    %p108 = por %p106, %p107
    %p110 = scmp.ne.s32.totalorder %s93, %s109
    %p111 = scmp.eq.s32.totalorder %s17, 0
    %p112 = por %p110, %p111
    %s113 = ssub.s32 %s18, %s30
    %p114 = scmp.eq.s32.totalorder %s113, 0
    %s116 = sadd.s32 %s115, 1
    %s117 = scalar_select %p114, %s115, %s116
    %p120 = pneg %p114
    %p121 = scmp.eq.s32.totalorder %s11, 1
    %p122 = por %p120, %p121
    %p123 = scmp.ne.s32.totalorder %s115, %s118
    %p124 = scmp.eq.s32.totalorder %s11, 0
    %p125 = por %p123, %p124
    %p126 = scmp.ne.s32.totalorder %s115, %s118
    %p127 = scmp.eq.s32.totalorder %s16, 1
    %p128 = por %p126, %p127
    %p129 = scmp.ne.s32.totalorder %s118, %s119
    %p130 = scmp.eq.s32.totalorder %s16, 0
    %p131 = por %p129, %p130
    %p132 = scmp.ne.s32.totalorder %s118, %s119
    %p133 = scmp.eq.s32.totalorder %s17, 1
    %p134 = por %p132, %p133
    %p136 = scmp.ne.s32.totalorder %s119, %s135
    %p137 = scmp.eq.s32.totalorder %s17, 0
    %p138 = por %p136, %p137
    %s139 = ssub.s32 %s18, %s30
    %p140 = scmp.eq.s32.totalorder %s139, 0
    %s142 = sadd.s32 %s141, 1
    %s143 = scalar_select %p140, %s141, %s142
    %p146 = pneg %p140
    %p147 = scmp.eq.s32.totalorder %s11, 1
    %p148 = por %p146, %p147
    %p149 = scmp.ne.s32.totalorder %s141, %s144
    %p150 = scmp.eq.s32.totalorder %s11, 0
    %p151 = por %p149, %p150
    %p152 = scmp.ne.s32.totalorder %s141, %s144
    %p153 = scmp.eq.s32.totalorder %s16, 1
    %p154 = por %p152, %p153
    %p155 = scmp.ne.s32.totalorder %s144, %s145
    %p156 = scmp.eq.s32.totalorder %s16, 0
    %p157 = por %p155, %p156
    %p158 = scmp.ne.s32.totalorder %s144, %s145
    %p159 = scmp.eq.s32.totalorder %s17, 1
    %p160 = por %p158, %p159
    %p162 = scmp.ne.s32.totalorder %s145, %s161
    %p163 = scmp.eq.s32.totalorder %s17, 0
    %p164 = por %p162, %p163
    %s165 = ssub.s32 %s18, %s30
    %p166 = scmp.eq.s32.totalorder %s165, 0
    %s168 = sadd.s32 %s167, 1
    %s169 = scalar_select %p166, %s167, %s168
    %p172 = pneg %p166
    %p173 = scmp.eq.s32.totalorder %s11, 1
    %p174 = por %p172, %p173
    %p175 = scmp.ne.s32.totalorder %s167, %s170
    %p176 = scmp.eq.s32.totalorder %s11, 0
    %p177 = por %p175, %p176
    %p178 = scmp.ne.s32.totalorder %s167, %s170
    %p179 = scmp.eq.s32.totalorder %s16, 1
    %p180 = por %p178, %p179
    %p181 = scmp.ne.s32.totalorder %s170, %s171
    %p182 = scmp.eq.s32.totalorder %s16, 0
    %p183 = por %p181, %p182
    %p184 = scmp.ne.s32.totalorder %s170, %s171
    %p185 = scmp.eq.s32.totalorder %s17, 1
    %p186 = por %p184, %p185
    %p188 = scmp.ne.s32.totalorder %s171, %s187
    %p189 = scmp.eq.s32.totalorder %s17, 0
    %p190 = por %p188, %p189
    %p191 = scmp.le.s32.totalorder 1, %s11
    %p192 = scmp.lt.s32.totalorder %s11, 3
    %p193 = pnand %p191, %p192
    %p194 = pneg %p193
    // Predicated region
    $region9: #{center_det_task_partial_losses.1} parent=5 // pred_check
      _
    $region10: #{center_det_task_partial_losses.1} parent=5 // pred_check_branch
      %196 = sbr.rel (%p193) target = $region12
    $region11: #{center_det_task_partial_losses.1} parent=5 // pred_region
      %s197 = ssub.s32 %s11, 1
    $region12: #{center_det_task_partial_losses.1} parent=5 // pred_fallthru
      _
    %p198 = scmp.lt.s32.totalorder %s11, 2
    // Predicated region
    $region13: #{center_det_task_partial_losses.1} parent=5 // pred_check
      %p199 = pneg %p198
    $region14: #{center_det_task_partial_losses.1} parent=5 // pred_check_branch
      %201 = sbr.rel (%p199) target = $region16
    $region15: #{center_det_task_partial_losses.1} parent=5 // pred_region
      // Predicated region
      $region17: #{center_det_task_partial_losses.1} parent=15 // pred_check
        %p202 = pneg %p45
      $region18: #{center_det_task_partial_losses.1} parent=15 // pred_check_branch
        %204 = sbr.rel (%p202) target = $region20
      $region19: #{center_det_task_partial_losses.1} parent=15 // pred_region
        %p205 = scmp.lt.s32.totalorder %s18, 1
        %s206 = scalar_select %p205, %s18, 1
        %p207 = scmp.lt.s32.totalorder %s19, 0
        %s208 = scalar_select %p207, %s19, 0
        %s209 = sadd.s32 %s208, %s206
        %s210 = smul.addr %s209, 8
        %s211 = scalar_lea.vmem %s0, %s210
      $region20: #{center_det_task_partial_losses.1} parent=15 // pred_fallthru
        _
      // Predicated region
      $region21: #{center_det_task_partial_losses.1} parent=15 // pred_check
        %p212 = pneg %p73
      $region22: #{center_det_task_partial_losses.1} parent=15 // pred_check_branch
        %214 = sbr.rel (%p212) target = $region24
      $region23: #{center_det_task_partial_losses.1} parent=15 // pred_region
        %p215 = scmp.lt.s32.totalorder %s18, 1
        %s216 = scalar_select %p215, %s18, 1
        %p217 = scmp.lt.s32.totalorder %s19, 0
        %s218 = scalar_select %p217, %s19, 0
        %s219 = sadd.s32 %s218, %s216
        %s220 = smul.addr %s219, 8
        %s221 = scalar_lea.vmem %s1, %s220
      $region24: #{center_det_task_partial_losses.1} parent=15 // pred_fallthru
        _
      // Predicated region
      $region25: #{center_det_task_partial_losses.1} parent=15 // pred_check
        %p222 = pneg %p99
      $region26: #{center_det_task_partial_losses.1} parent=15 // pred_check_branch
        %224 = sbr.rel (%p222) target = $region28
      $region27: #{center_det_task_partial_losses.1} parent=15 // pred_region
        %p225 = scmp.lt.s32.totalorder %s18, 1
        %s226 = scalar_select %p225, %s18, 1
        %s227 = smul.addr %s226, 2
        %s228 = scalar_lea.vmem %s2, %s227
      $region28: #{center_det_task_partial_losses.1} parent=15 // pred_fallthru
        _
      // Predicated region
      $region29: #{center_det_task_partial_losses.1} parent=15 // pred_check
        %p229 = pneg %p125
      $region30: #{center_det_task_partial_losses.1} parent=15 // pred_check_branch
        %231 = sbr.rel (%p229) target = $region32
      $region31: #{center_det_task_partial_losses.1} parent=15 // pred_region
        %p232 = scmp.lt.s32.totalorder %s18, 1
        %s233 = scalar_select %p232, %s18, 1
        %s234 = smul.addr %s233, 8
        %s235 = scalar_lea.vmem %s3, %s234
      $region32: #{center_det_task_partial_losses.1} parent=15 // pred_fallthru
        _
      // Predicated region
      $region33: #{center_det_task_partial_losses.1} parent=15 // pred_check
        %p236 = pneg %p151
      $region34: #{center_det_task_partial_losses.1} parent=15 // pred_check_branch
        %238 = sbr.rel (%p236) target = $region36
      $region35: #{center_det_task_partial_losses.1} parent=15 // pred_region
        %p239 = scmp.lt.s32.totalorder %s18, 1
        %s240 = scalar_select %p239, %s18, 1
        %s241 = smul.addr %s240, 8
        %s242 = scalar_lea.vmem %s4, %s241
      $region36: #{center_det_task_partial_losses.1} parent=15 // pred_fallthru
        _
    $region16: #{center_det_task_partial_losses.1} parent=5 // pred_fallthru
      _
    %p243 = scmp.le.s32.totalorder 1, %s11
    %p244 = scmp.lt.s32.totalorder %s11, 3
    %p245 = pnand %p243, %p244
    %p246 = pneg %p245
    // Predicated region
    $region37: #{center_det_task_partial_losses.1} parent=5 // pred_check
      _
    $region38: #{center_det_task_partial_losses.1} parent=5 // pred_check_branch
      %248 = sbr.rel (%p245) target = $region40
    $region39: #{center_det_task_partial_losses.1} parent=5 // pred_region
      %s249 = ssub.s32 %s11, 1
      %p250 = scmp.lt.s32.totalorder %s20, 1
      %s251 = scalar_select %p250, %s20, 1
      %p252 = scmp.lt.s32.totalorder %s21, 0
      %s253 = scalar_select %p252, %s21, 0
      %s254 = sadd.s32 %s253, %s251
      %s255 = smul.addr %s254, 8
      %s256 = scalar_lea.vmem %s0, %s255
      %p257 = pneg %p51
      %p258 = pneg %p48
      %p259 = scmp.lt.s32.totalorder %s20, 1
      %s260 = scalar_select %p259, %s20, 1
      %p261 = scmp.lt.s32.totalorder %s21, 0
      %s262 = scalar_select %p261, %s21, 0
      %s263 = sadd.s32 %s262, %s260
      %s264 = smul.addr %s263, 8
      %s265 = scalar_lea.vmem %s1, %s264
      %p266 = pneg %p79
      %p267 = pneg %p76
      %p268 = scmp.lt.s32.totalorder %s20, 1
      %s269 = scalar_select %p268, %s20, 1
      %s270 = smul.addr %s269, 2
      %s271 = scalar_lea.vmem %s2, %s270
      %p272 = pneg %p105
      %p273 = pneg %p102
      %p274 = scmp.lt.s32.totalorder %s20, 1
      %s275 = scalar_select %p274, %s20, 1
      %s276 = smul.addr %s275, 8
      %s277 = scalar_lea.vmem %s3, %s276
      %p278 = pneg %p131
      %p279 = pneg %p128
      %p280 = scmp.lt.s32.totalorder %s20, 1
      %s281 = scalar_select %p280, %s20, 1
      %s282 = smul.addr %s281, 8
      %s283 = scalar_lea.vmem %s4, %s282
      %p284 = pneg %p157
      %p285 = pneg %p154
      %p286 = pneg %p183
      %p287 = pneg %p180
      %p288 = scmp.lt.s32.totalorder %s20, 1
      %s289 = scalar_select %p288, %s20, 1
      %s290 = smul.addr %s289, 2
      %s291 = smul.addr %s290, 8
      %s292 = scalar_lea.vmem %s5, %s291
      %p293 = scmp.lt.s32.totalorder %s20, 1
      %s294 = scalar_select %p293, %s20, 1
      %p295 = scmp.lt.s32.totalorder %s21, 0
      %s296 = scalar_select %p295, %s21, 0
      %s297 = sadd.s32 %s296, %s294
      %s298 = smul.addr %s297, 8
      %s299 = scalar_lea.vmem %s0, %s298
      %p300 = scmp.lt.s32.totalorder %s20, 1
      %s301 = scalar_select %p300, %s20, 1
      %p302 = scmp.lt.s32.totalorder %s21, 0
      %s303 = scalar_select %p302, %s21, 0
      %s304 = sadd.s32 %s303, %s301
      %s305 = smul.addr %s304, 8
      %s306 = scalar_lea.vmem %s1, %s305
      %p307 = scmp.lt.s32.totalorder %s20, 1
      %s308 = scalar_select %p307, %s20, 1
      %s309 = smul.addr %s308, 2
      %s310 = scalar_lea.vmem %s2, %s309
      %p311 = scmp.lt.s32.totalorder %s20, 1
      %s312 = scalar_select %p311, %s20, 1
      %s313 = smul.addr %s312, 8
      %s314 = scalar_lea.vmem %s3, %s313
      %p315 = scmp.lt.s32.totalorder %s20, 1
      %s316 = scalar_select %p315, %s20, 1
      %s317 = smul.addr %s316, 8
      %s318 = scalar_lea.vmem %s4, %s317
      %p319 = scmp.lt.s32.totalorder %s20, 1
      %s320 = scalar_select %p319, %s20, 1
      %s321 = smul.addr %s320, 2
      %s322 = smul.addr %s321, 8
      %s323 = scalar_lea.vmem %s5, %s322
      %p324 = scmp.eq.s32.totalorder %s21, 0
      // Predicated region
      $region41: #{center_det_task_partial_losses.1} parent=39 // pred_check
        %p325 = pneg %p324
      $region42: #{center_det_task_partial_losses.1} parent=39 // pred_check_branch
        %327 = sbr.rel (%p325) target = $region44
      $region43: #{center_det_task_partial_losses.1} parent=39 // pred_region
        %v328 = vld [vmem:[%s310] sm:$0x3]
        %v329 = vld [vmem:[%s314] sm:$0xff]
        %v330 = vld [vmem:[%s318] sm:$0xff]
        %v331 = vxor.u32 %v328, 2147483648
        %v332 = vmul.f32 %v331, 1.442695
        %v333 = vpow.pop %v332
        %v334 = vadd.f32 %v333, 1.0
        %v335 = vrcp.pop %v334
        %v336 = vmul.f32 1.0, %v335
        %v337 = vmax.f32 %v336, 0.0001
        %v338 = vmin.f32 %v337, 0.9999
        %v339 = vsub.f32 1.0, %v338
        %v340 = vadd.f32 %v338, 1e-12
        %v341 = vlog2.pop %v340
        %v342 = vmul.f32 %v341, 0.6931472
        %v343 = vmul.f32 %v342, %v339
        %v344 = vmul.f32 %v343, %v339
        %v346 = vrot.slane %v328, 1
        %v348 = vmul.f32 %v344, %v346
        %v349 = vsub.f32 %v329, %v330
        %v350 = vand.u32 2147483647, %v349
        %v351 = vlaneseq
        %v352 = vshrl.u32 %v351, 7
        %v353 = vsub.s32 1, %v352
        %v354 = vrot.slane %v328, %v353
        %v355 = vmul.f32 %v350, %v354
        %v357 = vrot.slane %v348, 7
        %v359 = vrot.slane %v328, 7
        %vm361 = vcmask 1040384
        %v362 = vsel %vm361, 0.0, %v357
        %vm363 = vcmask 1041408
        %v364 = vsel %vm363, %v362, %v359
        %vm365 = vcmask 1042432
        %v366 = vsel %vm365, %v364, 0.0
        %367 = vst [vmem:[%s323] sm:$0xff] %v366
        %368 = vst [vmem:[%s323 + $0x8] sm:$0xff] %v355
      $region44: #{center_det_task_partial_losses.1} parent=39 // pred_fallthru
        _
      %v369 = vld [vmem:[%s299] sm:$0xff]
      %v370 = vld [vmem:[%s306] sm:$0xff]
      %v371 = vxor.u32 %v369, 2147483648
      %v372 = vmul.f32 %v371, 1.442695
      %v373 = vpow.pop %v372
      %v374 = vadd.f32 %v373, 1.0
      %v375 = vrcp.pop %v374
      %v376 = vmul.f32 1.0, %v375
      %v377 = vmax.f32 %v376, 0.0001
      %v378 = vmin.f32 %v377, 0.9999
      %v379 = vsub.f32 1.0, %v370
      %v380 = vmul.f32 %v379, %v379
      %v381 = vmul.f32 %v380, %v380
      %v382 = vsub.f32 1.0, %v378
      %v383 = vadd.f32 %v382, 1e-12
      %v384 = vlog2.pop %v383
      %v385 = vmul.f32 %v384, 0.6931472
      %v386 = vmul.f32 %v378, %v378
      %v387 = vmul.f32 %v385, %v386
      %v388 = vmul.f32 %v387, %v381
      %v389 = vrot.slane %v388, 4
      %v390 = vadd.f32 %v388, %v389
      %v391 = vrot.slane %v390, 2
      %v392 = vadd.f32 %v390, %v391
      %v393 = vrot.slane %v392, 1
      %v394 = vadd.f32 %v392, %v393
      %v395 = vld [vmem:[%s323] sm:$0x1]
      %v396 = vadd.f32 %v395, %v394
      %397 = vst [vmem:[%s323] sm:$0x1] %v396
      %p398 = scmp.lt.s32.totalorder %s20, 1
      %s399 = scalar_select %p398, %s20, 1
      %s400 = smul.addr %s399, 2
      %s401 = smul.addr %s400, 8
      %s402 = scalar_lea.vmem %s5, %s401
      // Predicated region
      $region45: #{center_det_task_partial_losses.1} parent=39 // pred_check
        %p403 = pneg %p180
      $region46: #{center_det_task_partial_losses.1} parent=39 // pred_check_branch
        %405 = sbr.rel (%p403) target = $region48
      $region47: #{center_det_task_partial_losses.1} parent=39 // pred_region
        _
      $region48: #{center_det_task_partial_losses.1} parent=39 // pred_fallthru
        _
    $region40: #{center_det_task_partial_losses.1} parent=5 // pred_fallthru
      _
    %p406 = scmp.le.s32.totalorder 2, %s11
    // Predicated region
    $region49: #{center_det_task_partial_losses.1} parent=5 // pred_check
      %p407 = pneg %p406
    $region50: #{center_det_task_partial_losses.1} parent=5 // pred_check_branch
      %409 = sbr.rel (%p407) target = $region52
    $region51: #{center_det_task_partial_losses.1} parent=5 // pred_region
      %s410 = ssub.s32 %s11, 2
      // Predicated region
      $region53: #{center_det_task_partial_losses.1} parent=51 // pred_check
        %p411 = pneg %p186
      $region54: #{center_det_task_partial_losses.1} parent=51 // pred_check_branch
        %413 = sbr.rel (%p411) target = $region56
      $region55: #{center_det_task_partial_losses.1} parent=51 // pred_region
        %p414 = scmp.lt.s32.totalorder %s22, 1
        %s415 = scalar_select %p414, %s22, 1
        %s416 = smul.addr %s415, 2
        %s417 = smul.addr %s416, 8
        %s418 = scalar_lea.vmem %s5, %s417
      $region56: #{center_det_task_partial_losses.1} parent=51 // pred_fallthru
        _
    $region52: #{center_det_task_partial_losses.1} parent=5 // pred_fallthru
      _
  $region6: #{center_det_task_partial_losses.1} parent=0 // loop_footer
    %s15 = sadd.s32 1, %s11
  $region7: #{center_det_task_partial_losses.1} parent=0 // loop_footer_branch
    %10 = sbr.rel target = $region3
  $region8: #{center_det_task_partial_losses.1} parent=0 // loop_exit
    _

</llo_original>
